<compile_context>
chip_gen: v5e
topology: v5e:2x2
jax: 0.10.0
libtpu: 0.0.40
codegen_flags: <defaults>
</compile_context>

<pallas_src>
import functools

import numpy as np
import jax
import jax.numpy as jnp
from jax.experimental import pallas as pl
from jax.experimental.pallas import tpu as pltpu


def _round_up(x: int, m: int) -> int:
    return (x + m - 1) // m * m


# ----------------------------------------------------------------------------
# Fused mapping-network kernel
# ----------------------------------------------------------------------------

def _mapping_fused_kernel(z_ref, gb0_ref, lw_ref, lb_ref, lngb_ref,
                          ow_ref, ob_ref, o_ref, *, dim_z, n_layers, eps):
    """One row-tile of the full mapping network.

    z_ref   : (tm, Dp)            f32   latent rows (feature-padded to Dp lanes)
    gb0_ref : (2, Dp)             f32   [gamma; beta] of the initial LayerNorm
    lw_ref  : (L, Dp, Dp)         bf16  per-layer Linear weights (already W^T)
    lb_ref  : (L, 1, Dp)          f32   per-layer Linear biases
    lngb_ref: (L, 2, Dp)          f32   per-layer LayerNorm [gamma; beta]
    ow_ref  : (Dp, Dp)            bf16  output Linear weight (W^T)
    ob_ref  : (1, Dp)             f32   output Linear bias
    o_ref   : (tm, Dp)            f32   styles
    """
    x = z_ref[...].astype(jnp.float32)                      # (tm, Dp)
    inv_d = jnp.float32(1.0 / dim_z)

    def layer_norm(v, g, b):
        # One-pass biased mean/variance (torch.nn.LayerNorm semantics: biased
        # var, eps added to variance).  Padded lanes of v are exactly 0
        # (zero-padded z / weights / biases), so no lane mask is needed and
        # dividing by the true dim_z gives the correct statistics.  sum(v) and
        # sum(v*v) are independent, so the two XLU reductions can overlap
        # instead of serializing through mu as in the two-pass formula.
        s = jnp.sum(v, axis=-1, keepdims=True)
        ss = jnp.sum(v * v, axis=-1, keepdims=True)
        mu = s * inv_d
        var = ss * inv_d - mu * mu
        # Padded gamma/beta are 0 -> padded lanes come out exactly 0.
        return (v - mu) * jax.lax.rsqrt(var + eps) * g + b

    gb0 = gb0_ref[...]
    x = layer_norm(x, gb0[0:1, :], gb0[1:2, :])

    # Small static trip count -> unrolled; weights indexed with static offsets.
    # TODO(synk): switch to lax.fori_loop with dynamic weight indexing if
    # n_layers grows beyond ~8 (vreg live-range pressure / spills).
    for li in range(n_layers):
        w = lw_ref[li]                                      # (Dp, Dp) bf16
        h = jnp.dot(x.astype(jnp.bfloat16), w,
                    preferred_element_type=jnp.float32)      # MXU, f32 accum
        h = h + lb_ref[li]                                  # (1, Dp) f32 bias
        gb = lngb_ref[li]                                   # (2, Dp)
        h = layer_norm(h, gb[0:1, :], gb[1:2, :])
        h = jnp.maximum(h, 0.01 * h)                        # LeakyReLU(0.01)
        x = x + h                                           # residual, f32

    out = jnp.dot(x.astype(jnp.bfloat16), ow_ref[...],
                  preferred_element_type=jnp.float32) + ob_ref[...]
    o_ref[...] = out.astype(o_ref.dtype)


# ----------------------------------------------------------------------------
# Row tiling: >= 2 grid steps (v7x dual-TC), bounded dead-row padding
# ----------------------------------------------------------------------------

def _choose_row_tiling(m: int, row_tile: int):
    m8 = _round_up(m, 8)                       # sublane alignment
    if m8 <= 16:
        return m8, m8                          # tiny problem: one block
    # At least 2 steps so both v7x TensorCores get work; for large m use
    # ~row_tile rows per step.  Keeping the step count even balances the two
    # TCs, and sizing tm from the step count bounds row padding by ~8*n_steps
    # rows instead of up to row_tile-1 dead rows.
    n_steps = max(2, -(-m8 // row_tile))
    if n_steps % 2:
        n_steps += 1
    tm = _round_up(-(-m8 // n_steps), 8)
    return tm, n_steps * tm


# ----------------------------------------------------------------------------
# Forward wrapper (jitted so pad / slice fuse with the surrounding program)
# ----------------------------------------------------------------------------

@functools.partial(jax.jit,
                   static_argnames=("dim_z", "n_layers", "d_pad", "row_tile"))
def _mapping_forward_impl(z, gb0, lw, lb, lngb, ow, ob, *,
                          dim_z, n_layers, d_pad, row_tile):
    n_styles, bsz, _ = z.shape
    m = n_styles * bsz
    tm, m_pad = _choose_row_tiling(m, row_tile)

    zf = z.reshape(m, dim_z).astype(jnp.float32)
    zf = jnp.pad(zf, ((0, m_pad - m), (0, d_pad - dim_z)))

    kernel = functools.partial(
        _mapping_fused_kernel, dim_z=dim_z, n_layers=n_layers, eps=1e-5)

    out = pl.pallas_call(
        kernel,
        out_shape=jax.ShapeDtypeStruct((m_pad, d_pad), jnp.float32),
        grid_spec=pltpu.PrefetchScalarGridSpec(
            num_scalar_prefetch=0,
            grid=(m_pad // tm,),
            in_specs=[
                pl.BlockSpec((tm, d_pad), lambda i: (i, 0)),            # z rows
                pl.BlockSpec((2, d_pad), lambda i: (0, 0)),             # norm g/b
                pl.BlockSpec((n_layers, d_pad, d_pad), lambda i: (0, 0, 0)),  # lin W^T
                pl.BlockSpec((n_layers, 1, d_pad), lambda i: (0, 0, 0)),      # lin b
                pl.BlockSpec((n_layers, 2, d_pad), lambda i: (0, 0, 0)),      # ln g/b
                pl.BlockSpec((d_pad, d_pad), lambda i: (0, 0)),         # out W^T
                pl.BlockSpec((1, d_pad), lambda i: (0, 0)),             # out b
            ],
            out_specs=pl.BlockSpec((tm, d_pad), lambda i: (i, 0)),
        ),
        compiler_params=pltpu.CompilerParams(
            dimension_semantics=("parallel",)),
    )(zf, gb0, lw, lb, lngb, ow, ob)

    return out[:m, :dim_z].reshape(n_styles, bsz, dim_z)


def mapping_forward(packed, z, *, row_tile=1024):
    """z: [n_styles, batch, dim_z] f32 -> w: [n_styles, batch, dim_z] f32."""
    assert z.shape[-1] == packed["dim_z"]
    return _mapping_forward_impl(
        z, packed["gb0"], packed["lw"], packed["lb"], packed["lngb"],
        packed["ow"], packed["ob"],
        dim_z=packed["dim_z"], n_layers=packed["n_layers"],
        d_pad=packed["d_pad"], row_tile=row_tile)


# ----------------------------------------------------------------------------
# Parameters (PyTorch-style init) + packing for the kernel
# ----------------------------------------------------------------------------

def init_mapping_params(key, dim_z, n_layers):
    assert n_layers >= 1
    keys = jax.random.split(key, 2 * n_layers + 2)
    bound = 1.0 / float(np.sqrt(dim_z))
    layers = []
    for li in range(n_layers):
        w = jax.random.uniform(keys[2 * li], (dim_z, dim_z), jnp.float32,
                               -bound, bound)                # [out, in]
        b = jax.random.uniform(keys[2 * li + 1], (dim_z,), jnp.float32,
                               -bound, bound)
        layers.append({"w": w, "b": b,
                       "ln_g": jnp.ones((dim_z,), jnp.float32),
                       "ln_b": jnp.zeros((dim_z,), jnp.float32)})
    return {
        "dim_z": dim_z, "n_layers": n_layers,
        "norm_g": jnp.ones((dim_z,), jnp.float32),
        "norm_b": jnp.zeros((dim_z,), jnp.float32),
        "layers": layers,
        "out_w": jax.random.uniform(keys[-2], (dim_z, dim_z), jnp.float32,
                                    -bound, bound),
        "out_b": jax.random.uniform(keys[-1], (dim_z,), jnp.float32,
                                    -bound, bound),
    }


def pack_params(p):
    """Pad features to 128 lanes, stack per-layer tensors, weights -> bf16."""
    dim_z, n_layers = p["dim_z"], p["n_layers"]
    d_pad = max(128, _round_up(dim_z, 128))
    pf = d_pad - dim_z

    def pad_vec(v):
        return jnp.pad(v, (0, pf))

    def pad_mat_t(w):                              # [out,in] -> padded W^T
        return jnp.pad(w.T, ((0, pf), (0, pf)))

    gb0 = jnp.stack([pad_vec(p["norm_g"]), pad_vec(p["norm_b"])])
    lw = jnp.stack([pad_mat_t(l["w"]) for l in p["layers"]])
    lb = jnp.stack([pad_vec(l["b"]) for l in p["layers"]])[:, None, :]
    lngb = jnp.stack([jnp.stack([pad_vec(l["ln_g"]), pad_vec(l["ln_b"])])
                      for l in p["layers"]])
    return {
        "dim_z": dim_z, "n_layers": n_layers, "d_pad": d_pad,
        "gb0": gb0.astype(jnp.float32),
        "lw": lw.astype(jnp.bfloat16),             # MXU operands in bf16
        "lb": lb.astype(jnp.float32),
        "lngb": lngb.astype(jnp.float32),
        "ow": pad_mat_t(p["out_w"]).astype(jnp.bfloat16),
        "ob": pad_vec(p["out_b"])[None, :].astype(jnp.float32),
    }


# ----------------------------------------------------------------------------
# Pure-JAX reference (mirrors the PyTorch module) for a correctness check
# ----------------------------------------------------------------------------

def mapping_reference(p, z):
    eps = 1e-5

    def ln(v, g, b):
        mu = v.mean(-1, keepdims=True)
        var = ((v - mu) ** 2).mean(-1, keepdims=True)
        return (v - mu) * jax.lax.rsqrt(var + eps) * g + b

    x = ln(z.astype(jnp.float32), p["norm_g"], p["norm_b"])
    for l in p["layers"]:
        h = x @ l["w"].T + l["b"]
        h = ln(h, l["ln_g"], l["ln_b"])
        h = jnp.where(h > 0, h, 0.01 * h)
        x = x + h
    return x @ p["out_w"].T + p["out_b"]


# ----------------------------------------------------------------------------
# Main
# ----------------------------------------------------------------------------

if __name__ == "__main__":
    dim_z = 32
    n_layers = 4
    n_styles = 3
    batch_size = 2

    key = jax.random.PRNGKey(0)
    pkey, zkey = jax.random.split(key)

    params = init_mapping_params(pkey, dim_z, n_layers)
    packed = pack_params(params)
    z = jax.random.normal(zkey, (n_styles, batch_size, dim_z), jnp.float32)

    w = mapping_forward(packed, z)
    w = jax.block_until_ready(w)

    assert w.shape == (n_styles, batch_size, dim_z), w.shape
    assert w.dtype == jnp.float32
    assert bool(jnp.all(jnp.isfinite(w)))

    # bf16 MXU operands, f32 accumulation / one-pass LN stats -> small drift.
    w_ref = mapping_reference(params, z)
    assert bool(jnp.allclose(w, w_ref, rtol=5e-2, atol=5e-2)), \
        float(jnp.max(jnp.abs(w - w_ref)))

    print("KERNEL_OK")
</pallas_src>

<mosaic_0001>
module attributes {stable_mosaic.version = 11 : i64} {
  func.func @_mapping_fused_kernel(%arg0: i32, %arg1: memref<8x128xf32, #tpu.memory_space<vmem>>, %arg2: memref<2x128xf32, #tpu.memory_space<vmem>>, %arg3: memref<4x128x128xbf16, #tpu.memory_space<vmem>>, %arg4: memref<4x1x128xf32, #tpu.memory_space<vmem>>, %arg5: memref<4x2x128xf32, #tpu.memory_space<vmem>>, %arg6: memref<128x128xbf16, #tpu.memory_space<vmem>>, %arg7: memref<1x128xf32, #tpu.memory_space<vmem>>, %arg8: memref<8x128xf32, #tpu.memory_space<vmem>>) attributes {dimension_semantics = [#tpu.dimension_semantics<parallel>], iteration_bounds = array<i64: 1>, scalar_prefetch = 0 : i64, scratch_operands = 0 : i64, tpu.core_type = #tpu.core_type<tc>, window_params = [{transform_indices = @transform_0, window_bounds = array<i64: 8, 128>}, {pipeline_mode = #tpu.pipeline_mode<synchronous>, transform_indices = @transform_1, window_bounds = array<i64: 2, 128>}, {pipeline_mode = #tpu.pipeline_mode<synchronous>, transform_indices = @transform_2, window_bounds = array<i64: 4, 128, 128>}, {pipeline_mode = #tpu.pipeline_mode<synchronous>, transform_indices = @transform_3, window_bounds = array<i64: 4, 1, 128>}, {pipeline_mode = #tpu.pipeline_mode<synchronous>, transform_indices = @transform_4, window_bounds = array<i64: 4, 2, 128>}, {pipeline_mode = #tpu.pipeline_mode<synchronous>, transform_indices = @transform_5, window_bounds = array<i64: 128, 128>}, {pipeline_mode = #tpu.pipeline_mode<synchronous>, transform_indices = @transform_6, window_bounds = array<i64: 1, 128>}, {transform_indices = @transform_7, window_bounds = array<i64: 8, 128>}]} {
    %c0 = arith.constant 0 : index
    %c0_0 = arith.constant 0 : index
    %0 = vector.load %arg1[%c0, %c0_0] : memref<8x128xf32, #tpu.memory_space<vmem>>, vector<8x128xf32>
    %c0_1 = arith.constant 0 : index
    %c0_2 = arith.constant 0 : index
    %1 = vector.load %arg2[%c0_1, %c0_2] : memref<2x128xf32, #tpu.memory_space<vmem>>, vector<2x128xf32>
    %2 = vector.extract_strided_slice %1 {offsets = [0, 0], sizes = [1, 128], strides = [1, 1]} : vector<2x128xf32> to vector<1x128xf32>
    %3 = vector.extract_strided_slice %1 {offsets = [1, 0], sizes = [1, 128], strides = [1, 1]} : vector<2x128xf32> to vector<1x128xf32>
    %cst = arith.constant dense<0.000000e+00> : vector<8xf32>
    %4 = vector.multi_reduction <add>, %0, %cst [1] : vector<8x128xf32> to vector<8xf32>
    %5 = vector.shape_cast %4 : vector<8xf32> to vector<8x1xf32>
    %6 = arith.mulf %0, %0 : vector<8x128xf32>
    %cst_3 = arith.constant dense<0.000000e+00> : vector<8xf32>
    %7 = vector.multi_reduction <add>, %6, %cst_3 [1] : vector<8x128xf32> to vector<8xf32>
    %8 = vector.shape_cast %7 : vector<8xf32> to vector<8x1xf32>
    %cst_4 = arith.constant 3.125000e-02 : f32
    %9 = vector.broadcast %cst_4 : f32 to vector<8x1xf32>
    %10 = arith.mulf %5, %9 : vector<8x1xf32>
    %cst_5 = arith.constant 3.125000e-02 : f32
    %11 = vector.broadcast %cst_5 : f32 to vector<8x1xf32>
    %12 = arith.mulf %8, %11 : vector<8x1xf32>
    %13 = arith.mulf %10, %10 : vector<8x1xf32>
    %14 = arith.subf %12, %13 : vector<8x1xf32>
    %15 = vector.broadcast %10 : vector<8x1xf32> to vector<8x128xf32>
    %16 = arith.subf %0, %15 : vector<8x128xf32>
    %cst_6 = arith.constant 9.99999974E-6 : f32
    %17 = vector.broadcast %cst_6 : f32 to vector<8x1xf32>
    %18 = arith.addf %14, %17 : vector<8x1xf32>
    %19 = math.rsqrt %18 : vector<8x1xf32>
    %20 = vector.broadcast %19 : vector<8x1xf32> to vector<8x128xf32>
    %21 = arith.mulf %16, %20 : vector<8x128xf32>
    %22 = vector.broadcast %2 : vector<1x128xf32> to vector<8x128xf32>
    %23 = arith.mulf %21, %22 : vector<8x128xf32>
    %24 = vector.broadcast %3 : vector<1x128xf32> to vector<8x128xf32>
    %25 = arith.addf %23, %24 : vector<8x128xf32>
    %c0_7 = arith.constant 0 : index
    %c0_8 = arith.constant 0 : index
    %c0_9 = arith.constant 0 : index
    %26 = vector.load %arg3[%c0_7, %c0_8, %c0_9] : memref<4x128x128xbf16, #tpu.memory_space<vmem>>, vector<1x128x128xbf16>
    %27 = vector.shape_cast %26 : vector<1x128x128xbf16> to vector<128x128xbf16>
    %28 = arith.truncf %25 : vector<8x128xf32> to vector<8x128xbf16>
    %cst_10 = arith.constant dense<0.000000e+00> : vector<8x128xf32>
    %29 = tpu.matmul %28, %27, %cst_10 {dimension_numbers = #tpu.dot_dimension_numbers<[1], [0], [0], [1], [0, 0, 1, 1], [], []>} : vector<8x128xbf16>, vector<128x128xbf16>, vector<8x128xf32> -> vector<8x128xf32>
    %c0_11 = arith.constant 0 : index
    %c0_12 = arith.constant 0 : index
    %c0_13 = arith.constant 0 : index
    %30 = vector.load %arg4[%c0_11, %c0_12, %c0_13] : memref<4x1x128xf32, #tpu.memory_space<vmem>>, vector<1x1x128xf32>
    %31 = vector.shape_cast %30 : vector<1x1x128xf32> to vector<1x128xf32>
    %32 = vector.broadcast %31 : vector<1x128xf32> to vector<8x128xf32>
    %33 = arith.addf %29, %32 : vector<8x128xf32>
    %c0_14 = arith.constant 0 : index
    %c0_15 = arith.constant 0 : index
    %c0_16 = arith.constant 0 : index
    %34 = vector.load %arg5[%c0_14, %c0_15, %c0_16] : memref<4x2x128xf32, #tpu.memory_space<vmem>>, vector<1x2x128xf32>
    %35 = vector.shape_cast %34 : vector<1x2x128xf32> to vector<2x128xf32>
    %36 = vector.extract_strided_slice %35 {offsets = [0, 0], sizes = [1, 128], strides = [1, 1]} : vector<2x128xf32> to vector<1x128xf32>
    %37 = vector.extract_strided_slice %35 {offsets = [1, 0], sizes = [1, 128], strides = [1, 1]} : vector<2x128xf32> to vector<1x128xf32>
    %cst_17 = arith.constant dense<0.000000e+00> : vector<8xf32>
    %38 = vector.multi_reduction <add>, %33, %cst_17 [1] : vector<8x128xf32> to vector<8xf32>
    %39 = vector.shape_cast %38 : vector<8xf32> to vector<8x1xf32>
    %40 = arith.mulf %33, %33 : vector<8x128xf32>
    %cst_18 = arith.constant dense<0.000000e+00> : vector<8xf32>
    %41 = vector.multi_reduction <add>, %40, %cst_18 [1] : vector<8x128xf32> to vector<8xf32>
    %42 = vector.shape_cast %41 : vector<8xf32> to vector<8x1xf32>
    %cst_19 = arith.constant 3.125000e-02 : f32
    %43 = vector.broadcast %cst_19 : f32 to vector<8x1xf32>
    %44 = arith.mulf %39, %43 : vector<8x1xf32>
    %cst_20 = arith.constant 3.125000e-02 : f32
    %45 = vector.broadcast %cst_20 : f32 to vector<8x1xf32>
    %46 = arith.mulf %42, %45 : vector<8x1xf32>
    %47 = arith.mulf %44, %44 : vector<8x1xf32>
    %48 = arith.subf %46, %47 : vector<8x1xf32>
    %49 = vector.broadcast %44 : vector<8x1xf32> to vector<8x128xf32>
    %50 = arith.subf %33, %49 : vector<8x128xf32>
    %cst_21 = arith.constant 9.99999974E-6 : f32
    %51 = vector.broadcast %cst_21 : f32 to vector<8x1xf32>
    %52 = arith.addf %48, %51 : vector<8x1xf32>
    %53 = math.rsqrt %52 : vector<8x1xf32>
    %54 = vector.broadcast %53 : vector<8x1xf32> to vector<8x128xf32>
    %55 = arith.mulf %50, %54 : vector<8x128xf32>
    %56 = vector.broadcast %36 : vector<1x128xf32> to vector<8x128xf32>
    %57 = arith.mulf %55, %56 : vector<8x128xf32>
    %58 = vector.broadcast %37 : vector<1x128xf32> to vector<8x128xf32>
    %59 = arith.addf %57, %58 : vector<8x128xf32>
    %cst_22 = arith.constant 0.00999999977 : f32
    %60 = vector.broadcast %cst_22 : f32 to vector<8x128xf32>
    %61 = arith.mulf %60, %59 : vector<8x128xf32>
    %62 = arith.maximumf %59, %61 : vector<8x128xf32>
    %63 = arith.addf %25, %62 : vector<8x128xf32>
    %c1 = arith.constant 1 : index
    %c0_23 = arith.constant 0 : index
    %c0_24 = arith.constant 0 : index
    %64 = vector.load %arg3[%c1, %c0_23, %c0_24] : memref<4x128x128xbf16, #tpu.memory_space<vmem>>, vector<1x128x128xbf16>
    %65 = vector.shape_cast %64 : vector<1x128x128xbf16> to vector<128x128xbf16>
    %66 = arith.truncf %63 : vector<8x128xf32> to vector<8x128xbf16>
    %cst_25 = arith.constant dense<0.000000e+00> : vector<8x128xf32>
    %67 = tpu.matmul %66, %65, %cst_25 {dimension_numbers = #tpu.dot_dimension_numbers<[1], [0], [0], [1], [0, 0, 1, 1], [], []>} : vector<8x128xbf16>, vector<128x128xbf16>, vector<8x128xf32> -> vector<8x128xf32>
    %c1_26 = arith.constant 1 : index
    %c0_27 = arith.constant 0 : index
    %c0_28 = arith.constant 0 : index
    %68 = vector.load %arg4[%c1_26, %c0_27, %c0_28] : memref<4x1x128xf32, #tpu.memory_space<vmem>>, vector<1x1x128xf32>
    %69 = vector.shape_cast %68 : vector<1x1x128xf32> to vector<1x128xf32>
    %70 = vector.broadcast %69 : vector<1x128xf32> to vector<8x128xf32>
    %71 = arith.addf %67, %70 : vector<8x128xf32>
    %c1_29 = arith.constant 1 : index
    %c0_30 = arith.constant 0 : index
    %c0_31 = arith.constant 0 : index
    %72 = vector.load %arg5[%c1_29, %c0_30, %c0_31] : memref<4x2x128xf32, #tpu.memory_space<vmem>>, vector<1x2x128xf32>
    %73 = vector.shape_cast %72 : vector<1x2x128xf32> to vector<2x128xf32>
    %74 = vector.extract_strided_slice %73 {offsets = [0, 0], sizes = [1, 128], strides = [1, 1]} : vector<2x128xf32> to vector<1x128xf32>
    %75 = vector.extract_strided_slice %73 {offsets = [1, 0], sizes = [1, 128], strides = [1, 1]} : vector<2x128xf32> to vector<1x128xf32>
    %cst_32 = arith.constant dense<0.000000e+00> : vector<8xf32>
    %76 = vector.multi_reduction <add>, %71, %cst_32 [1] : vector<8x128xf32> to vector<8xf32>
    %77 = vector.shape_cast %76 : vector<8xf32> to vector<8x1xf32>
    %78 = arith.mulf %71, %71 : vector<8x128xf32>
    %cst_33 = arith.constant dense<0.000000e+00> : vector<8xf32>
    %79 = vector.multi_reduction <add>, %78, %cst_33 [1] : vector<8x128xf32> to vector<8xf32>
    %80 = vector.shape_cast %79 : vector<8xf32> to vector<8x1xf32>
    %cst_34 = arith.constant 3.125000e-02 : f32
    %81 = vector.broadcast %cst_34 : f32 to vector<8x1xf32>
    %82 = arith.mulf %77, %81 : vector<8x1xf32>
    %cst_35 = arith.constant 3.125000e-02 : f32
    %83 = vector.broadcast %cst_35 : f32 to vector<8x1xf32>
    %84 = arith.mulf %80, %83 : vector<8x1xf32>
    %85 = arith.mulf %82, %82 : vector<8x1xf32>
    %86 = arith.subf %84, %85 : vector<8x1xf32>
    %87 = vector.broadcast %82 : vector<8x1xf32> to vector<8x128xf32>
    %88 = arith.subf %71, %87 : vector<8x128xf32>
    %cst_36 = arith.constant 9.99999974E-6 : f32
    %89 = vector.broadcast %cst_36 : f32 to vector<8x1xf32>
    %90 = arith.addf %86, %89 : vector<8x1xf32>
    %91 = math.rsqrt %90 : vector<8x1xf32>
    %92 = vector.broadcast %91 : vector<8x1xf32> to vector<8x128xf32>
    %93 = arith.mulf %88, %92 : vector<8x128xf32>
    %94 = vector.broadcast %74 : vector<1x128xf32> to vector<8x128xf32>
    %95 = arith.mulf %93, %94 : vector<8x128xf32>
    %96 = vector.broadcast %75 : vector<1x128xf32> to vector<8x128xf32>
    %97 = arith.addf %95, %96 : vector<8x128xf32>
    %cst_37 = arith.constant 0.00999999977 : f32
    %98 = vector.broadcast %cst_37 : f32 to vector<8x128xf32>
    %99 = arith.mulf %98, %97 : vector<8x128xf32>
    %100 = arith.maximumf %97, %99 : vector<8x128xf32>
    %101 = arith.addf %63, %100 : vector<8x128xf32>
    %c2 = arith.constant 2 : index
    %c0_38 = arith.constant 0 : index
    %c0_39 = arith.constant 0 : index
    %102 = vector.load %arg3[%c2, %c0_38, %c0_39] : memref<4x128x128xbf16, #tpu.memory_space<vmem>>, vector<1x128x128xbf16>
    %103 = vector.shape_cast %102 : vector<1x128x128xbf16> to vector<128x128xbf16>
    %104 = arith.truncf %101 : vector<8x128xf32> to vector<8x128xbf16>
    %cst_40 = arith.constant dense<0.000000e+00> : vector<8x128xf32>
    %105 = tpu.matmul %104, %103, %cst_40 {dimension_numbers = #tpu.dot_dimension_numbers<[1], [0], [0], [1], [0, 0, 1, 1], [], []>} : vector<8x128xbf16>, vector<128x128xbf16>, vector<8x128xf32> -> vector<8x128xf32>
    %c2_41 = arith.constant 2 : index
    %c0_42 = arith.constant 0 : index
    %c0_43 = arith.constant 0 : index
    %106 = vector.load %arg4[%c2_41, %c0_42, %c0_43] : memref<4x1x128xf32, #tpu.memory_space<vmem>>, vector<1x1x128xf32>
    %107 = vector.shape_cast %106 : vector<1x1x128xf32> to vector<1x128xf32>
    %108 = vector.broadcast %107 : vector<1x128xf32> to vector<8x128xf32>
    %109 = arith.addf %105, %108 : vector<8x128xf32>
    %c2_44 = arith.constant 2 : index
    %c0_45 = arith.constant 0 : index
    %c0_46 = arith.constant 0 : index
    %110 = vector.load %arg5[%c2_44, %c0_45, %c0_46] : memref<4x2x128xf32, #tpu.memory_space<vmem>>, vector<1x2x128xf32>
    %111 = vector.shape_cast %110 : vector<1x2x128xf32> to vector<2x128xf32>
    %112 = vector.extract_strided_slice %111 {offsets = [0, 0], sizes = [1, 128], strides = [1, 1]} : vector<2x128xf32> to vector<1x128xf32>
    %113 = vector.extract_strided_slice %111 {offsets = [1, 0], sizes = [1, 128], strides = [1, 1]} : vector<2x128xf32> to vector<1x128xf32>
    %cst_47 = arith.constant dense<0.000000e+00> : vector<8xf32>
    %114 = vector.multi_reduction <add>, %109, %cst_47 [1] : vector<8x128xf32> to vector<8xf32>
    %115 = vector.shape_cast %114 : vector<8xf32> to vector<8x1xf32>
    %116 = arith.mulf %109, %109 : vector<8x128xf32>
    %cst_48 = arith.constant dense<0.000000e+00> : vector<8xf32>
    %117 = vector.multi_reduction <add>, %116, %cst_48 [1] : vector<8x128xf32> to vector<8xf32>
    %118 = vector.shape_cast %117 : vector<8xf32> to vector<8x1xf32>
    %cst_49 = arith.constant 3.125000e-02 : f32
    %119 = vector.broadcast %cst_49 : f32 to vector<8x1xf32>
    %120 = arith.mulf %115, %119 : vector<8x1xf32>
    %cst_50 = arith.constant 3.125000e-02 : f32
    %121 = vector.broadcast %cst_50 : f32 to vector<8x1xf32>
    %122 = arith.mulf %118, %121 : vector<8x1xf32>
    %123 = arith.mulf %120, %120 : vector<8x1xf32>
    %124 = arith.subf %122, %123 : vector<8x1xf32>
    %125 = vector.broadcast %120 : vector<8x1xf32> to vector<8x128xf32>
    %126 = arith.subf %109, %125 : vector<8x128xf32>
    %cst_51 = arith.constant 9.99999974E-6 : f32
    %127 = vector.broadcast %cst_51 : f32 to vector<8x1xf32>
    %128 = arith.addf %124, %127 : vector<8x1xf32>
    %129 = math.rsqrt %128 : vector<8x1xf32>
    %130 = vector.broadcast %129 : vector<8x1xf32> to vector<8x128xf32>
    %131 = arith.mulf %126, %130 : vector<8x128xf32>
    %132 = vector.broadcast %112 : vector<1x128xf32> to vector<8x128xf32>
    %133 = arith.mulf %131, %132 : vector<8x128xf32>
    %134 = vector.broadcast %113 : vector<1x128xf32> to vector<8x128xf32>
    %135 = arith.addf %133, %134 : vector<8x128xf32>
    %cst_52 = arith.constant 0.00999999977 : f32
    %136 = vector.broadcast %cst_52 : f32 to vector<8x128xf32>
    %137 = arith.mulf %136, %135 : vector<8x128xf32>
    %138 = arith.maximumf %135, %137 : vector<8x128xf32>
    %139 = arith.addf %101, %138 : vector<8x128xf32>
    %c3 = arith.constant 3 : index
    %c0_53 = arith.constant 0 : index
    %c0_54 = arith.constant 0 : index
    %140 = vector.load %arg3[%c3, %c0_53, %c0_54] : memref<4x128x128xbf16, #tpu.memory_space<vmem>>, vector<1x128x128xbf16>
    %141 = vector.shape_cast %140 : vector<1x128x128xbf16> to vector<128x128xbf16>
    %142 = arith.truncf %139 : vector<8x128xf32> to vector<8x128xbf16>
    %cst_55 = arith.constant dense<0.000000e+00> : vector<8x128xf32>
    %143 = tpu.matmul %142, %141, %cst_55 {dimension_numbers = #tpu.dot_dimension_numbers<[1], [0], [0], [1], [0, 0, 1, 1], [], []>} : vector<8x128xbf16>, vector<128x128xbf16>, vector<8x128xf32> -> vector<8x128xf32>
    %c3_56 = arith.constant 3 : index
    %c0_57 = arith.constant 0 : index
    %c0_58 = arith.constant 0 : index
    %144 = vector.load %arg4[%c3_56, %c0_57, %c0_58] : memref<4x1x128xf32, #tpu.memory_space<vmem>>, vector<1x1x128xf32>
    %145 = vector.shape_cast %144 : vector<1x1x128xf32> to vector<1x128xf32>
    %146 = vector.broadcast %145 : vector<1x128xf32> to vector<8x128xf32>
    %147 = arith.addf %143, %146 : vector<8x128xf32>
    %c3_59 = arith.constant 3 : index
    %c0_60 = arith.constant 0 : index
    %c0_61 = arith.constant 0 : index
    %148 = vector.load %arg5[%c3_59, %c0_60, %c0_61] : memref<4x2x128xf32, #tpu.memory_space<vmem>>, vector<1x2x128xf32>
    %149 = vector.shape_cast %148 : vector<1x2x128xf32> to vector<2x128xf32>
    %150 = vector.extract_strided_slice %149 {offsets = [0, 0], sizes = [1, 128], strides = [1, 1]} : vector<2x128xf32> to vector<1x128xf32>
    %151 = vector.extract_strided_slice %149 {offsets = [1, 0], sizes = [1, 128], strides = [1, 1]} : vector<2x128xf32> to vector<1x128xf32>
    %cst_62 = arith.constant dense<0.000000e+00> : vector<8xf32>
    %152 = vector.multi_reduction <add>, %147, %cst_62 [1] : vector<8x128xf32> to vector<8xf32>
    %153 = vector.shape_cast %152 : vector<8xf32> to vector<8x1xf32>
    %154 = arith.mulf %147, %147 : vector<8x128xf32>
    %cst_63 = arith.constant dense<0.000000e+00> : vector<8xf32>
    %155 = vector.multi_reduction <add>, %154, %cst_63 [1] : vector<8x128xf32> to vector<8xf32>
    %156 = vector.shape_cast %155 : vector<8xf32> to vector<8x1xf32>
    %cst_64 = arith.constant 3.125000e-02 : f32
    %157 = vector.broadcast %cst_64 : f32 to vector<8x1xf32>
    %158 = arith.mulf %153, %157 : vector<8x1xf32>
    %cst_65 = arith.constant 3.125000e-02 : f32
    %159 = vector.broadcast %cst_65 : f32 to vector<8x1xf32>
    %160 = arith.mulf %156, %159 : vector<8x1xf32>
    %161 = arith.mulf %158, %158 : vector<8x1xf32>
    %162 = arith.subf %160, %161 : vector<8x1xf32>
    %163 = vector.broadcast %158 : vector<8x1xf32> to vector<8x128xf32>
    %164 = arith.subf %147, %163 : vector<8x128xf32>
    %cst_66 = arith.constant 9.99999974E-6 : f32
    %165 = vector.broadcast %cst_66 : f32 to vector<8x1xf32>
    %166 = arith.addf %162, %165 : vector<8x1xf32>
    %167 = math.rsqrt %166 : vector<8x1xf32>
    %168 = vector.broadcast %167 : vector<8x1xf32> to vector<8x128xf32>
    %169 = arith.mulf %164, %168 : vector<8x128xf32>
    %170 = vector.broadcast %150 : vector<1x128xf32> to vector<8x128xf32>
    %171 = arith.mulf %169, %170 : vector<8x128xf32>
    %172 = vector.broadcast %151 : vector<1x128xf32> to vector<8x128xf32>
    %173 = arith.addf %171, %172 : vector<8x128xf32>
    %cst_67 = arith.constant 0.00999999977 : f32
    %174 = vector.broadcast %cst_67 : f32 to vector<8x128xf32>
    %175 = arith.mulf %174, %173 : vector<8x128xf32>
    %176 = arith.maximumf %173, %175 : vector<8x128xf32>
    %177 = arith.addf %139, %176 : vector<8x128xf32>
    %178 = arith.truncf %177 : vector<8x128xf32> to vector<8x128xbf16>
    %c0_68 = arith.constant 0 : index
    %c0_69 = arith.constant 0 : index
    %179 = vector.load %arg6[%c0_68, %c0_69] : memref<128x128xbf16, #tpu.memory_space<vmem>>, vector<128x128xbf16>
    %cst_70 = arith.constant dense<0.000000e+00> : vector<8x128xf32>
    %180 = tpu.matmul %178, %179, %cst_70 {dimension_numbers = #tpu.dot_dimension_numbers<[1], [0], [0], [1], [0, 0, 1, 1], [], []>} : vector<8x128xbf16>, vector<128x128xbf16>, vector<8x128xf32> -> vector<8x128xf32>
    %c0_71 = arith.constant 0 : index
    %c0_72 = arith.constant 0 : index
    %181 = vector.load %arg7[%c0_71, %c0_72] : memref<1x128xf32, #tpu.memory_space<vmem>>, vector<1x128xf32>
    %182 = vector.broadcast %181 : vector<1x128xf32> to vector<8x128xf32>
    %183 = arith.addf %180, %182 : vector<8x128xf32>
    %c0_73 = arith.constant 0 : index
    %c0_74 = arith.constant 0 : index
    %184 = vector.load %arg8[%c0_73, %c0_74] : memref<8x128xf32, #tpu.memory_space<vmem>>, vector<8x128xf32>
    tpu.vector_store %arg8[%c0_73, %c0_74], %183 {strides = array<i32>} : memref<8x128xf32, #tpu.memory_space<vmem>>, vector<8x128xf32>,
    return
  }
  func.func @transform_0(%arg0: i32) -> (i32, i32) {
    %c0_i32 = arith.constant 0 : i32
    %c0_i32_0 = arith.constant 0 : i32
    return %arg0, %c0_i32 : i32, i32
  }
  func.func @transform_1(%arg0: i32) -> (i32, i32) {
    %c0_i32 = arith.constant 0 : i32
    %c0_i32_0 = arith.constant 0 : i32
    %c0_i32_1 = arith.constant 0 : i32
    return %c0_i32, %c0_i32_0 : i32, i32
  }
  func.func @transform_2(%arg0: i32) -> (i32, i32, i32) {
    %c0_i32 = arith.constant 0 : i32
    %c0_i32_0 = arith.constant 0 : i32
    %c0_i32_1 = arith.constant 0 : i32
    %c0_i32_2 = arith.constant 0 : i32
    return %c0_i32, %c0_i32_0, %c0_i32_1 : i32, i32, i32
  }
  func.func @transform_3(%arg0: i32) -> (i32, i32, i32) {
    %c0_i32 = arith.constant 0 : i32
    %c0_i32_0 = arith.constant 0 : i32
    %c0_i32_1 = arith.constant 0 : i32
    %c0_i32_2 = arith.constant 0 : i32
    return %c0_i32, %c0_i32_0, %c0_i32_1 : i32, i32, i32
  }
  func.func @transform_4(%arg0: i32) -> (i32, i32, i32) {
    %c0_i32 = arith.constant 0 : i32
    %c0_i32_0 = arith.constant 0 : i32
    %c0_i32_1 = arith.constant 0 : i32
    %c0_i32_2 = arith.constant 0 : i32
    return %c0_i32, %c0_i32_0, %c0_i32_1 : i32, i32, i32
  }
  func.func @transform_5(%arg0: i32) -> (i32, i32) {
    %c0_i32 = arith.constant 0 : i32
    %c0_i32_0 = arith.constant 0 : i32
    %c0_i32_1 = arith.constant 0 : i32
    return %c0_i32, %c0_i32_0 : i32, i32
  }
  func.func @transform_6(%arg0: i32) -> (i32, i32) {
    %c0_i32 = arith.constant 0 : i32
    %c0_i32_0 = arith.constant 0 : i32
    %c0_i32_1 = arith.constant 0 : i32
    return %c0_i32, %c0_i32_0 : i32, i32
  }
  func.func @transform_7(%arg0: i32) -> (i32, i32) {
    %c0_i32 = arith.constant 0 : i32
    %c0_i32_0 = arith.constant 0 : i32
    return %arg0, %c0_i32 : i32, i32
  }
}

</mosaic_0001>

<llo_original>
// kernel: _mapping_forward_impl.1
$region0: #{_mapping_forward_impl.1}
  #allocation0 [shape = 'u32[]', space=smem, size = 0x4, offset = 0x4, fixed_abs, tag = 'smem constant byte address 0x4 - core index']
  #allocation1 [shape = 'u32[72,128]{1,0:T(1,128)}', space=vmem, size = 0x9000, scoped, tag = 'internal scratch']
  %s0 = inlined_call_operand.vmem [shape: f32[8,128], index: 0, kind: input, shape index: {}]
  %s1 = inlined_call_operand.vmem [shape: f32[2,128], index: 1, kind: input, shape index: {}]
  %s2 = inlined_call_operand.hbm [shape: bf16[4,128,128], index: 2, kind: input, shape index: {}]
  %s3 = inlined_call_operand.vmem [shape: f32[4,1,128], index: 3, kind: input, shape index: {}]
  %s4 = inlined_call_operand.vmem [shape: f32[4,2,128], index: 4, kind: input, shape index: {}]
  %s5 = inlined_call_operand.hbm [shape: bf16[128,128], index: 5, kind: input, shape index: {}]
  %s6 = inlined_call_operand.vmem [shape: f32[1,128], index: 6, kind: input, shape index: {}]
  %s7 = inlined_call_operand.vmem [shape: f32[8,128], index: 7, kind: output, shape index: {}]
  %s8 = sld [smem:[#allocation0]]
  $region46: #{_mapping_forward_impl.1} parent=0
    _
  %s10 = ssub.s32 1, %s8
  %s11 = scalar_select 0, %s10, %s8
  $region1: #{_mapping_forward_impl.1} parent=0
    #allocation2 [shape = 'u8[131072]{0}', space=vmem, size = 0x20000, scoped, tag = 'input window, operand 2, single buffered']
    #allocation3 [shape = 's32[1]{0}', space=sflag, size = 0x4, scoped, tag = 'scoped memory for _mapping_forward_impl.1']
    #allocation4 [shape = 'u8[32768]{0}', space=vmem, size = 0x8000, scoped, tag = 'input window, operand 5, single buffered']
    #allocation5 [shape = 's32[1]{0}', space=sflag, size = 0x4, scoped, tag = 'scoped memory for _mapping_forward_impl.1']
    %12 = vsyncpa [#allocation3], 0
    %13 = vsyncpa [#allocation5], 0
    // Predicated region
    $region2: #{_mapping_forward_impl.1} parent=1 // pred_check
      _
    $region3: #{_mapping_forward_impl.1} parent=1 // pred_check_branch
      %15 = sbr.rel (0) target = $region5
    $region4: #{_mapping_forward_impl.1} parent=1 // pred_region
      _
    $region5: #{_mapping_forward_impl.1} parent=1 // pred_fallthru
      _
    // Predicated region
    $region6: #{_mapping_forward_impl.1} parent=1 // pred_check
      _
    $region7: #{_mapping_forward_impl.1} parent=1 // pred_check_branch
      %17 = sbr.rel (0) target = $region9
    $region8: #{_mapping_forward_impl.1} parent=1 // pred_region
      _
    $region9: #{_mapping_forward_impl.1} parent=1 // pred_fallthru
      _
    // Predicated region
    $region10: #{_mapping_forward_impl.1} parent=1 // pred_check
      _
    $region11: #{_mapping_forward_impl.1} parent=1 // pred_check_branch
      %19 = sbr.rel (0) target = $region13
    $region12: #{_mapping_forward_impl.1} parent=1 // pred_region
      %21 = vsyncadd [#allocation3], 0
      %s22 = sshll.u32 %s2, 4
      %s23 = int_to_ptr.hbm [resolvable:$true] %s22
      %s24 = sshll.u32 [#allocation2], 4
      %s25 = int_to_ptr.vmem [resolvable:$true] %s24
      %30 = dma.hbm_to_vmem [thread:$0]  %s23, 4096, %s25, [#allocation3], 64, 64, 4
    $region13: #{_mapping_forward_impl.1} parent=1 // pred_fallthru
      _
    // Predicated region
    $region14: #{_mapping_forward_impl.1} parent=1 // pred_check
      _
    $region15: #{_mapping_forward_impl.1} parent=1 // pred_check_branch
      %32 = sbr.rel (0) target = $region17
    $region16: #{_mapping_forward_impl.1} parent=1 // pred_region
      _
    $region17: #{_mapping_forward_impl.1} parent=1 // pred_fallthru
      _
    // Predicated region
    $region18: #{_mapping_forward_impl.1} parent=1 // pred_check
      _
    $region19: #{_mapping_forward_impl.1} parent=1 // pred_check_branch
      %34 = sbr.rel (0) target = $region21
    $region20: #{_mapping_forward_impl.1} parent=1 // pred_region
      _
    $region21: #{_mapping_forward_impl.1} parent=1 // pred_fallthru
      _
    // Predicated region
    $region22: #{_mapping_forward_impl.1} parent=1 // pred_check
      _
    $region23: #{_mapping_forward_impl.1} parent=1 // pred_check_branch
      %36 = sbr.rel (0) target = $region25
    $region24: #{_mapping_forward_impl.1} parent=1 // pred_region
      %38 = vsyncadd [#allocation5], 0
      %s39 = sshll.u32 %s5, 4
      %s40 = int_to_ptr.hbm [resolvable:$true] %s39
      %s41 = sshll.u32 [#allocation4], 4
      %s42 = int_to_ptr.vmem [resolvable:$true] %s41
      %47 = dma.hbm_to_vmem [thread:$0]  %s40, 1024, %s42, [#allocation5], 64, 64, 4
    $region25: #{_mapping_forward_impl.1} parent=1 // pred_fallthru
      _
    // Predicated region
    $region26: #{_mapping_forward_impl.1} parent=1 // pred_check
      _
    $region27: #{_mapping_forward_impl.1} parent=1 // pred_check_branch
      %49 = sbr.rel (0) target = $region29
    $region28: #{_mapping_forward_impl.1} parent=1 // pred_region
      _
    $region29: #{_mapping_forward_impl.1} parent=1 // pred_fallthru
      _
    // Predicated region
    $region30: #{_mapping_forward_impl.1} parent=1 // pred_check
      _
    $region31: #{_mapping_forward_impl.1} parent=1 // pred_check_branch
      %51 = sbr.rel (0) target = $region33
    $region32: #{_mapping_forward_impl.1} parent=1 // pred_region
      %53 = dma.done [#allocation3], 4096
    $region33: #{_mapping_forward_impl.1} parent=1 // pred_fallthru
      _
    // Predicated region
    $region34: #{_mapping_forward_impl.1} parent=1 // pred_check
      _
    $region35: #{_mapping_forward_impl.1} parent=1 // pred_check_branch
      %55 = sbr.rel (0) target = $region37
    $region36: #{_mapping_forward_impl.1} parent=1 // pred_region
      %57 = dma.done [#allocation5], 1024
    $region37: #{_mapping_forward_impl.1} parent=1 // pred_fallthru
      _
    %v58 = vld [vmem:[%s0] sm:$0xff]
    %v59 = vld [vmem:[%s1] sm:$0x3]
    %60 = vadd.xlane.f32.xlu0 %v58
    %v61 = vpop.xlane.xlu0 %60
    %v62 = vmul.f32 %v58, %v58
    %63 = vadd.xlane.f32.xlu0 %v62
    %v64 = vpop.xlane.xlu0 %63
    %v65 = vmul.f32 %v61, 0.03125
    %v66 = vmul.f32 %v64, 0.03125
    %v67 = vmul.f32 %v65, %v65
    %v68 = vsub.f32 %v66, %v67
    %v69 = vsub.f32 %v58, %v65
    %v70 = vadd.f32 %v68, 1e-05
    %v71 = vrsqrt.pop %v70
    %v72 = vmul.f32 %v71, %v70
    %v73 = vmul.f32 %v72, %v71
    %v74 = vmul.f32 0.5, %v73
    %v75 = vsub.f32 1.5, %v74
    %v76 = vmul.f32 %v71, %v75
    %vm77 = vweird.f32 %v70
    %vm78 = vweird.f32 %v71
    %vm79 = vmor %vm77, %vm78
    %v80 = vsel %vm79, %v71, %v76
    %v81 = vmul.f32 %v69, %v80
    %v82 = vperm.slane %v59, 0
    %v83 = vmul.f32 %v81, %v82
    %v84 = vperm.slane %v59, 1
    %v85 = vadd.f32 %v83, %v84
    %v86 = vld [vmem:[#allocation2] sm:$0xf]
    %v87 = vld [vmem:[#allocation2 + $0x4] sm:$0xf]
    %v88 = vld [vmem:[#allocation2 + $0x8] sm:$0xf]
    %v89 = vld [vmem:[#allocation2 + $0xc] sm:$0xf]
    %v90 = vld [vmem:[#allocation2 + $0x10] sm:$0xf]
    %v91 = vld [vmem:[#allocation2 + $0x14] sm:$0xf]
    %v92 = vld [vmem:[#allocation2 + $0x18] sm:$0xf]
    %v93 = vld [vmem:[#allocation2 + $0x1c] sm:$0xf]
    %v94 = vld [vmem:[#allocation2 + $0x20] sm:$0xf]
    %v95 = vld [vmem:[#allocation2 + $0x24] sm:$0xf]
    %v96 = vld [vmem:[#allocation2 + $0x28] sm:$0xf]
    %v97 = vld [vmem:[#allocation2 + $0x2c] sm:$0xf]
    %v98 = vld [vmem:[#allocation2 + $0x30] sm:$0xf]
    %v99 = vld [vmem:[#allocation2 + $0x34] sm:$0xf]
    %v100 = vld [vmem:[#allocation2 + $0x38] sm:$0xf]
    %v101 = vld [vmem:[#allocation2 + $0x3c] sm:$0xf]
    %v102 = vpack.c.bf16 %v85, %v85
    %v103 = vld [vmem:[%s3] sm:$0x1]
    %v105 = vperm.slane %v103, 0
    %v123 = vunpack.c.l.b16 %v86
    %v124 = vunpack.c.l.b16 %v87
    %v125 = vunpack.c.l.b16 %v88
    %v126 = vunpack.c.l.b16 %v89
    %v127 = vunpack.c.l.b16 %v90
    %v128 = vunpack.c.l.b16 %v91
    %v129 = vunpack.c.l.b16 %v92
    %v130 = vunpack.c.l.b16 %v93
    %v131 = vunpack.c.l.b16 %v94
    %v132 = vunpack.c.l.b16 %v95
    %v133 = vunpack.c.l.b16 %v96
    %v134 = vunpack.c.l.b16 %v97
    %v135 = vunpack.c.l.b16 %v98
    %v136 = vunpack.c.l.b16 %v99
    %v137 = vunpack.c.l.b16 %v100
    %v138 = vunpack.c.l.b16 %v101
    %v139 = vpack.c.b16 %v124, %v123
    %v140 = vpack.c.b16 %v126, %v125
    %v141 = vpack.c.b16 %v128, %v127
    %v142 = vpack.c.b16 %v130, %v129
    %v143 = vpack.c.b16 %v132, %v131
    %v144 = vpack.c.b16 %v134, %v133
    %v145 = vpack.c.b16 %v136, %v135
    %v146 = vpack.c.b16 %v138, %v137
    %155 = vmatpush.bf16.msra.mxu0 %v146
    %156 = vmatpush.bf16.msra.mxu0 %v145
    %157 = vmatpush.bf16.msra.mxu0 %v144
    %158 = vmatpush.bf16.msra.mxu0 %v143
    %159 = vmatpush.bf16.msra.mxu0 %v142
    %160 = vmatpush.bf16.msra.mxu0 %v141
    %161 = vmatpush.bf16.msra.mxu0 %v140
    %162 = vmatpush.bf16.msra.mxu0 %v139
    %163 = vmatmul.bf16.gmra.mxu0 %v102
    %v164 = vpop.f32.mrf.mxu0
    %v165 = vadd.f32 %v105, %v164
    %v166 = vpop.f32.mrf.mxu0
    %167 = vdwg.mxu0
    %v168 = vld [vmem:[%s4] sm:$0x3]
    %169 = vadd.xlane.f32.xlu0 %v165
    %v170 = vpop.xlane.xlu0 %169
    %v171 = vmul.f32 %v165, %v165
    %172 = vadd.xlane.f32.xlu0 %v171
    %v173 = vpop.xlane.xlu0 %172
    %v174 = vmul.f32 %v170, 0.03125
    %v175 = vmul.f32 %v173, 0.03125
    %v176 = vmul.f32 %v174, %v174
    %v177 = vsub.f32 %v175, %v176
    %v178 = vsub.f32 %v165, %v174
    %v179 = vadd.f32 %v177, 1e-05
    %v180 = vrsqrt.pop %v179
    %v181 = vmul.f32 %v180, %v179
    %v182 = vmul.f32 %v181, %v180
    %v183 = vmul.f32 0.5, %v182
    %v184 = vsub.f32 1.5, %v183
    %v185 = vmul.f32 %v180, %v184
    %vm186 = vweird.f32 %v179
    %vm187 = vweird.f32 %v180
    %vm188 = vmor %vm186, %vm187
    %v189 = vsel %vm188, %v180, %v185
    %v190 = vmul.f32 %v178, %v189
    %v191 = vperm.slane %v168, 0
    %v192 = vmul.f32 %v190, %v191
    %v193 = vperm.slane %v168, 1
    %v194 = vadd.f32 %v192, %v193
    %v195 = vmul.f32 %v194, 0.01
    %v196 = vmax.f32 %v194, %v195
    %v197 = vadd.f32 %v85, %v196
    %s198 = scalar_lea.vmem [#allocation2], 64
    %v199 = vld [vmem:[%s198] sm:$0xf]
    %v200 = vld [vmem:[%s198 + $0x4] sm:$0xf]
    %v201 = vld [vmem:[%s198 + $0x8] sm:$0xf]
    %v202 = vld [vmem:[%s198 + $0xc] sm:$0xf]
    %v203 = vld [vmem:[%s198 + $0x10] sm:$0xf]
    %v204 = vld [vmem:[%s198 + $0x14] sm:$0xf]
    %v205 = vld [vmem:[%s198 + $0x18] sm:$0xf]
    %v206 = vld [vmem:[%s198 + $0x1c] sm:$0xf]
    %v207 = vld [vmem:[%s198 + $0x20] sm:$0xf]
    %v208 = vld [vmem:[%s198 + $0x24] sm:$0xf]
    %v209 = vld [vmem:[%s198 + $0x28] sm:$0xf]
    %v210 = vld [vmem:[%s198 + $0x2c] sm:$0xf]
    %v211 = vld [vmem:[%s198 + $0x30] sm:$0xf]
    %v212 = vld [vmem:[%s198 + $0x34] sm:$0xf]
    %v213 = vld [vmem:[%s198 + $0x38] sm:$0xf]
    %v214 = vld [vmem:[%s198 + $0x3c] sm:$0xf]
    %v215 = vpack.c.bf16 %v197, %v197
    %s216 = scalar_lea.vmem %s3, 1
    %v217 = vld [vmem:[%s216] sm:$0x1]
    %v219 = vperm.slane %v217, 0
    %v237 = vunpack.c.l.b16 %v199
    %v238 = vunpack.c.l.b16 %v200
    %v239 = vunpack.c.l.b16 %v201
    %v240 = vunpack.c.l.b16 %v202
    %v241 = vunpack.c.l.b16 %v203
    %v242 = vunpack.c.l.b16 %v204
    %v243 = vunpack.c.l.b16 %v205
    %v244 = vunpack.c.l.b16 %v206
    %v245 = vunpack.c.l.b16 %v207
    %v246 = vunpack.c.l.b16 %v208
    %v247 = vunpack.c.l.b16 %v209
    %v248 = vunpack.c.l.b16 %v210
    %v249 = vunpack.c.l.b16 %v211
    %v250 = vunpack.c.l.b16 %v212
    %v251 = vunpack.c.l.b16 %v213
    %v252 = vunpack.c.l.b16 %v214
    %v253 = vpack.c.b16 %v238, %v237
    %v254 = vpack.c.b16 %v240, %v239
    %v255 = vpack.c.b16 %v242, %v241
    %v256 = vpack.c.b16 %v244, %v243
    %v257 = vpack.c.b16 %v246, %v245
    %v258 = vpack.c.b16 %v248, %v247
    %v259 = vpack.c.b16 %v250, %v249
    %v260 = vpack.c.b16 %v252, %v251
    %269 = vmatpush.bf16.msra.mxu0 %v260
    %270 = vmatpush.bf16.msra.mxu0 %v259
    %271 = vmatpush.bf16.msra.mxu0 %v258
    %272 = vmatpush.bf16.msra.mxu0 %v257
    %273 = vmatpush.bf16.msra.mxu0 %v256
    %274 = vmatpush.bf16.msra.mxu0 %v255
    %275 = vmatpush.bf16.msra.mxu0 %v254
    %276 = vmatpush.bf16.msra.mxu0 %v253
    %277 = vmatmul.bf16.gmra.mxu0 %v215
    %v278 = vpop.f32.mrf.mxu0
    %v279 = vadd.f32 %v219, %v278
    %v280 = vpop.f32.mrf.mxu0
    %281 = vdwg.mxu0
    %s282 = scalar_lea.vmem %s4, 2
    %v283 = vld [vmem:[%s282] sm:$0x3]
    %284 = vadd.xlane.f32.xlu0 %v279
    %v285 = vpop.xlane.xlu0 %284
    %v286 = vmul.f32 %v279, %v279
    %287 = vadd.xlane.f32.xlu0 %v286
    %v288 = vpop.xlane.xlu0 %287
    %v289 = vmul.f32 %v285, 0.03125
    %v290 = vmul.f32 %v288, 0.03125
    %v291 = vmul.f32 %v289, %v289
    %v292 = vsub.f32 %v290, %v291
    %v293 = vsub.f32 %v279, %v289
    %v294 = vadd.f32 %v292, 1e-05
    %v295 = vrsqrt.pop %v294
    %v296 = vmul.f32 %v295, %v294
    %v297 = vmul.f32 %v296, %v295
    %v298 = vmul.f32 0.5, %v297
    %v299 = vsub.f32 1.5, %v298
    %v300 = vmul.f32 %v295, %v299
    %vm301 = vweird.f32 %v294
    %vm302 = vweird.f32 %v295
    %vm303 = vmor %vm301, %vm302
    %v304 = vsel %vm303, %v295, %v300
    %v305 = vmul.f32 %v293, %v304
    %v306 = vperm.slane %v283, 0
    %v307 = vmul.f32 %v305, %v306
    %v308 = vperm.slane %v283, 1
    %v309 = vadd.f32 %v307, %v308
    %v310 = vmul.f32 %v309, 0.01
    %v311 = vmax.f32 %v309, %v310
    %v312 = vadd.f32 %v197, %v311
    %s313 = scalar_lea.vmem [#allocation2], 128
    %v314 = vld [vmem:[%s313] sm:$0xf]
    %v315 = vld [vmem:[%s313 + $0x4] sm:$0xf]
    %v316 = vld [vmem:[%s313 + $0x8] sm:$0xf]
    %v317 = vld [vmem:[%s313 + $0xc] sm:$0xf]
    %v318 = vld [vmem:[%s313 + $0x10] sm:$0xf]
    %v319 = vld [vmem:[%s313 + $0x14] sm:$0xf]
    %v320 = vld [vmem:[%s313 + $0x18] sm:$0xf]
    %v321 = vld [vmem:[%s313 + $0x1c] sm:$0xf]
    %v322 = vld [vmem:[%s313 + $0x20] sm:$0xf]
    %v323 = vld [vmem:[%s313 + $0x24] sm:$0xf]
    %v324 = vld [vmem:[%s313 + $0x28] sm:$0xf]
    %v325 = vld [vmem:[%s313 + $0x2c] sm:$0xf]
    %v326 = vld [vmem:[%s313 + $0x30] sm:$0xf]
    %v327 = vld [vmem:[%s313 + $0x34] sm:$0xf]
    %v328 = vld [vmem:[%s313 + $0x38] sm:$0xf]
    %v329 = vld [vmem:[%s313 + $0x3c] sm:$0xf]
    %v330 = vpack.c.bf16 %v312, %v312
    %s331 = scalar_lea.vmem %s3, 2
    %v332 = vld [vmem:[%s331] sm:$0x1]
    %v334 = vperm.slane %v332, 0
    %v352 = vunpack.c.l.b16 %v314
    %v353 = vunpack.c.l.b16 %v315
    %v354 = vunpack.c.l.b16 %v316
    %v355 = vunpack.c.l.b16 %v317
    %v356 = vunpack.c.l.b16 %v318
    %v357 = vunpack.c.l.b16 %v319
    %v358 = vunpack.c.l.b16 %v320
    %v359 = vunpack.c.l.b16 %v321
    %v360 = vunpack.c.l.b16 %v322
    %v361 = vunpack.c.l.b16 %v323
    %v362 = vunpack.c.l.b16 %v324
    %v363 = vunpack.c.l.b16 %v325
    %v364 = vunpack.c.l.b16 %v326
    %v365 = vunpack.c.l.b16 %v327
    %v366 = vunpack.c.l.b16 %v328
    %v367 = vunpack.c.l.b16 %v329
    %v368 = vpack.c.b16 %v353, %v352
    %v369 = vpack.c.b16 %v355, %v354
    %v370 = vpack.c.b16 %v357, %v356
    %v371 = vpack.c.b16 %v359, %v358
    %v372 = vpack.c.b16 %v361, %v360
    %v373 = vpack.c.b16 %v363, %v362
    %v374 = vpack.c.b16 %v365, %v364
    %v375 = vpack.c.b16 %v367, %v366
    %384 = vmatpush.bf16.msra.mxu0 %v375
    %385 = vmatpush.bf16.msra.mxu0 %v374
    %386 = vmatpush.bf16.msra.mxu0 %v373
    %387 = vmatpush.bf16.msra.mxu0 %v372
    %388 = vmatpush.bf16.msra.mxu0 %v371
    %389 = vmatpush.bf16.msra.mxu0 %v370
    %390 = vmatpush.bf16.msra.mxu0 %v369
    %391 = vmatpush.bf16.msra.mxu0 %v368
    %392 = vmatmul.bf16.gmra.mxu0 %v330
    %v393 = vpop.f32.mrf.mxu0
    %v394 = vadd.f32 %v334, %v393
    %v395 = vpop.f32.mrf.mxu0
    %396 = vdwg.mxu0
    %s397 = scalar_lea.vmem %s4, 4
    %v398 = vld [vmem:[%s397] sm:$0x3]
    %399 = vadd.xlane.f32.xlu0 %v394
    %v400 = vpop.xlane.xlu0 %399
    %v401 = vmul.f32 %v394, %v394
    %402 = vadd.xlane.f32.xlu0 %v401
    %v403 = vpop.xlane.xlu0 %402
    %v404 = vmul.f32 %v400, 0.03125
    %v405 = vmul.f32 %v403, 0.03125
    %v406 = vmul.f32 %v404, %v404
    %v407 = vsub.f32 %v405, %v406
    %v408 = vsub.f32 %v394, %v404
    %v409 = vadd.f32 %v407, 1e-05
    %v410 = vrsqrt.pop %v409
    %v411 = vmul.f32 %v410, %v409
    %v412 = vmul.f32 %v411, %v410
    %v413 = vmul.f32 0.5, %v412
    %v414 = vsub.f32 1.5, %v413
    %v415 = vmul.f32 %v410, %v414
    %vm416 = vweird.f32 %v409
    %vm417 = vweird.f32 %v410
    %vm418 = vmor %vm416, %vm417
    %v419 = vsel %vm418, %v410, %v415
    %v420 = vmul.f32 %v408, %v419
    %v421 = vperm.slane %v398, 0
    %v422 = vmul.f32 %v420, %v421
    %v423 = vperm.slane %v398, 1
    %v424 = vadd.f32 %v422, %v423
    %v425 = vmul.f32 %v424, 0.01
    %v426 = vmax.f32 %v424, %v425
    %v427 = vadd.f32 %v312, %v426
    %s428 = scalar_lea.vmem [#allocation2], 192
    %v429 = vld [vmem:[%s428] sm:$0xf]
    %v430 = vld [vmem:[%s428 + $0x4] sm:$0xf]
    %v431 = vld [vmem:[%s428 + $0x8] sm:$0xf]
    %v432 = vld [vmem:[%s428 + $0xc] sm:$0xf]
    %v433 = vld [vmem:[%s428 + $0x10] sm:$0xf]
    %v434 = vld [vmem:[%s428 + $0x14] sm:$0xf]
    %v435 = vld [vmem:[%s428 + $0x18] sm:$0xf]
    %v436 = vld [vmem:[%s428 + $0x1c] sm:$0xf]
    %v437 = vld [vmem:[%s428 + $0x20] sm:$0xf]
    %v438 = vld [vmem:[%s428 + $0x24] sm:$0xf]
    %v439 = vld [vmem:[%s428 + $0x28] sm:$0xf]
    %v440 = vld [vmem:[%s428 + $0x2c] sm:$0xf]
    %v441 = vld [vmem:[%s428 + $0x30] sm:$0xf]
    %v442 = vld [vmem:[%s428 + $0x34] sm:$0xf]
    %v443 = vld [vmem:[%s428 + $0x38] sm:$0xf]
    %v444 = vld [vmem:[%s428 + $0x3c] sm:$0xf]
    %v445 = vpack.c.bf16 %v427, %v427
    %s446 = scalar_lea.vmem %s3, 3
    %v447 = vld [vmem:[%s446] sm:$0x1]
    %v449 = vperm.slane %v447, 0
    %v467 = vunpack.c.l.b16 %v429
    %v468 = vunpack.c.l.b16 %v430
    %v469 = vunpack.c.l.b16 %v431
    %v470 = vunpack.c.l.b16 %v432
    %v471 = vunpack.c.l.b16 %v433
    %v472 = vunpack.c.l.b16 %v434
    %v473 = vunpack.c.l.b16 %v435
    %v474 = vunpack.c.l.b16 %v436
    %v475 = vunpack.c.l.b16 %v437
    %v476 = vunpack.c.l.b16 %v438
    %v477 = vunpack.c.l.b16 %v439
    %v478 = vunpack.c.l.b16 %v440
    %v479 = vunpack.c.l.b16 %v441
    %v480 = vunpack.c.l.b16 %v442
    %v481 = vunpack.c.l.b16 %v443
    %v482 = vunpack.c.l.b16 %v444
    %v483 = vpack.c.b16 %v468, %v467
    %v484 = vpack.c.b16 %v470, %v469
    %v485 = vpack.c.b16 %v472, %v471
    %v486 = vpack.c.b16 %v474, %v473
    %v487 = vpack.c.b16 %v476, %v475
    %v488 = vpack.c.b16 %v478, %v477
    %v489 = vpack.c.b16 %v480, %v479
    %v490 = vpack.c.b16 %v482, %v481
    %499 = vmatpush.bf16.msra.mxu0 %v490
    %500 = vmatpush.bf16.msra.mxu0 %v489
    %501 = vmatpush.bf16.msra.mxu0 %v488
    %502 = vmatpush.bf16.msra.mxu0 %v487
    %503 = vmatpush.bf16.msra.mxu0 %v486
    %504 = vmatpush.bf16.msra.mxu0 %v485
    %505 = vmatpush.bf16.msra.mxu0 %v484
    %506 = vmatpush.bf16.msra.mxu0 %v483
    %507 = vmatmul.bf16.gmra.mxu0 %v445
    %v508 = vpop.f32.mrf.mxu0
    %v509 = vadd.f32 %v449, %v508
    %v510 = vpop.f32.mrf.mxu0
    %511 = vdwg.mxu0
    %s512 = scalar_lea.vmem %s4, 6
    %v513 = vld [vmem:[%s512] sm:$0x3]
    %514 = vadd.xlane.f32.xlu0 %v509
    %v515 = vpop.xlane.xlu0 %514
    %v516 = vmul.f32 %v509, %v509
    %517 = vadd.xlane.f32.xlu0 %v516
    %v518 = vpop.xlane.xlu0 %517
    %v519 = vmul.f32 %v515, 0.03125
    %v520 = vmul.f32 %v518, 0.03125
    %v521 = vmul.f32 %v519, %v519
    %v522 = vsub.f32 %v520, %v521
    %v523 = vsub.f32 %v509, %v519
    %v524 = vadd.f32 %v522, 1e-05
    %v525 = vrsqrt.pop %v524
    %v526 = vmul.f32 %v525, %v524
    %v527 = vmul.f32 %v526, %v525
    %v528 = vmul.f32 0.5, %v527
    %v529 = vsub.f32 1.5, %v528
    %v530 = vmul.f32 %v525, %v529
    %vm531 = vweird.f32 %v524
    %vm532 = vweird.f32 %v525
    %vm533 = vmor %vm531, %vm532
    %v534 = vsel %vm533, %v525, %v530
    %v535 = vmul.f32 %v523, %v534
    %v536 = vperm.slane %v513, 0
    %v537 = vmul.f32 %v535, %v536
    %v538 = vperm.slane %v513, 1
    %v539 = vadd.f32 %v537, %v538
    %v540 = vmul.f32 %v539, 0.01
    %v541 = vmax.f32 %v539, %v540
    %v542 = vadd.f32 %v427, %v541
    %v543 = vpack.c.bf16 %v542, %v542
    %v544 = vld [vmem:[#allocation4] sm:$0xf]
    %v545 = vld [vmem:[#allocation4 + $0x4] sm:$0xf]
    %v546 = vld [vmem:[#allocation4 + $0x8] sm:$0xf]
    %v547 = vld [vmem:[#allocation4 + $0xc] sm:$0xf]
    %v548 = vld [vmem:[#allocation4 + $0x10] sm:$0xf]
    %v549 = vld [vmem:[#allocation4 + $0x14] sm:$0xf]
    %v550 = vld [vmem:[#allocation4 + $0x18] sm:$0xf]
    %v551 = vld [vmem:[#allocation4 + $0x1c] sm:$0xf]
    %v552 = vld [vmem:[#allocation4 + $0x20] sm:$0xf]
    %v553 = vld [vmem:[#allocation4 + $0x24] sm:$0xf]
    %v554 = vld [vmem:[#allocation4 + $0x28] sm:$0xf]
    %v555 = vld [vmem:[#allocation4 + $0x2c] sm:$0xf]
    %v556 = vld [vmem:[#allocation4 + $0x30] sm:$0xf]
    %v557 = vld [vmem:[#allocation4 + $0x34] sm:$0xf]
    %v558 = vld [vmem:[#allocation4 + $0x38] sm:$0xf]
    %v559 = vld [vmem:[#allocation4 + $0x3c] sm:$0xf]
    %v560 = vld [vmem:[%s6] sm:$0x1]
    %v562 = vperm.slane %v560, 0
    %v580 = vunpack.c.l.b16 %v544
    %v581 = vunpack.c.l.b16 %v545
    %v582 = vunpack.c.l.b16 %v546
    %v583 = vunpack.c.l.b16 %v547
    %v584 = vunpack.c.l.b16 %v548
    %v585 = vunpack.c.l.b16 %v549
    %v586 = vunpack.c.l.b16 %v550
    %v587 = vunpack.c.l.b16 %v551
    %v588 = vunpack.c.l.b16 %v552
    %v589 = vunpack.c.l.b16 %v553
    %v590 = vunpack.c.l.b16 %v554
    %v591 = vunpack.c.l.b16 %v555
    %v592 = vunpack.c.l.b16 %v556
    %v593 = vunpack.c.l.b16 %v557
    %v594 = vunpack.c.l.b16 %v558
    %v595 = vunpack.c.l.b16 %v559
    %v596 = vpack.c.b16 %v581, %v580
    %v597 = vpack.c.b16 %v583, %v582
    %v598 = vpack.c.b16 %v585, %v584
    %v599 = vpack.c.b16 %v587, %v586
    %v600 = vpack.c.b16 %v589, %v588
    %v601 = vpack.c.b16 %v591, %v590
    %v602 = vpack.c.b16 %v593, %v592
    %v603 = vpack.c.b16 %v595, %v594
    %612 = vmatpush.bf16.msra.mxu0 %v603
    %613 = vmatpush.bf16.msra.mxu0 %v602
    %614 = vmatpush.bf16.msra.mxu0 %v601
    %615 = vmatpush.bf16.msra.mxu0 %v600
    %616 = vmatpush.bf16.msra.mxu0 %v599
    %617 = vmatpush.bf16.msra.mxu0 %v598
    %618 = vmatpush.bf16.msra.mxu0 %v597
    %619 = vmatpush.bf16.msra.mxu0 %v596
    %620 = vmatmul.bf16.gmra.mxu0 %v543
    %v621 = vpop.f32.mrf.mxu0
    %v622 = vadd.f32 %v562, %v621
    %v623 = vpop.f32.mrf.mxu0
    %624 = vdwg.mxu0
    %625 = vst [vmem:[%s7] sm:$0xff] %v622
    // Predicated region
    $region38: #{_mapping_forward_impl.1} parent=1 // pred_check
      _
    $region39: #{_mapping_forward_impl.1} parent=1 // pred_check_branch
      %627 = sbr.rel (0) target = $region41
    $region40: #{_mapping_forward_impl.1} parent=1 // pred_region
      _
    $region41: #{_mapping_forward_impl.1} parent=1 // pred_fallthru
      _
    // Predicated region
    $region42: #{_mapping_forward_impl.1} parent=1 // pred_check
      _
    $region43: #{_mapping_forward_impl.1} parent=1 // pred_check_branch
      %629 = sbr.rel (0) target = $region45
    $region44: #{_mapping_forward_impl.1} parent=1 // pred_region
      _
    $region45: #{_mapping_forward_impl.1} parent=1 // pred_fallthru
      _
    %630 = vsyncpa [#allocation3], 1
    %631 = vsyncpa [#allocation5], 1

</llo_original>
